<compile_context>
chip_gen: v5e
topology: v5e:2x2
jax: 0.10.0
libtpu: 0.0.40
codegen_flags: <defaults>
</compile_context>

<pallas_src>
import jax
import jax.numpy as jnp
from jax.experimental import pallas as pl
from jax.experimental.pallas import tpu as pltpu


def _round_up(x: int, m: int) -> int:
    return ((x + m - 1) // m) * m


def _masked_mse_kernel(pred_ref, target_ref, mask_ref, sse_ref, msum_ref):
    p = pred_ref[...].astype(jnp.float32)
    t = target_ref[...].astype(jnp.float32)
    m = mask_ref[...].astype(jnp.float32)

    diff = p * m - t            # VPU elementwise
    d2 = diff * diff

    tr, ln = d2.shape
    # Fold (tile_rows, lanes) -> (8, lanes) with pure VPU vreg adds.  The
    # reshape splits the second-minor dim by the sublane tiling factor (8),
    # so it is layout-preserving (free); summing axis 0 adds whole vregs.
    sse_ref[...] = jnp.sum(d2.reshape(tr // 8, 8, ln), axis=0)
    msum_ref[...] = jnp.sum(m.reshape(tr // 8, 8, ln), axis=0)


def masked_mse_loss(pred, target, mask, *, lanes=1024, tile_rows=512):
    """Pallas equivalent of MaskedMSELoss.forward. Returns a scalar f32."""
    assert pred.shape == target.shape == mask.shape
    assert lanes % 128 == 0 and tile_rows % 8 == 0

    n = pred.size
    rows = pl.cdiv(n, lanes)
    # Clamp the tile so tiny inputs don't over-pad; keep it a multiple of 8.
    tile_rows = min(tile_rows, _round_up(rows, 8))
    rows_padded = _round_up(rows, tile_rows)
    num_blocks = rows_padded // tile_rows
    total = rows_padded * lanes

    def _prep(x):
        x = x.reshape(-1)
        if total != n:
            x = jnp.pad(x, (0, total - n))          # zero pad -> contributes 0
        return x.reshape(rows_padded, lanes)        # lane-dense layout

    p2, t2, m2 = _prep(pred), _prep(target), _prep(mask)

    in_spec = pl.BlockSpec((tile_rows, lanes), lambda i: (i, 0))
    out_spec = pl.BlockSpec((8, lanes), lambda i: (i, 0))

    out_bytes = 2 * num_blocks * 8 * lanes * 4
    in_bytes = sum(int(x.size) * x.dtype.itemsize for x in (p2, t2, m2))

    sse_part, m_part = pl.pallas_call(
        _masked_mse_kernel,
        grid=(num_blocks,),
        in_specs=[in_spec, in_spec, in_spec],
        out_specs=(out_spec, out_spec),
        out_shape=(
            jax.ShapeDtypeStruct((num_blocks * 8, lanes), jnp.float32),
            jax.ShapeDtypeStruct((num_blocks * 8, lanes), jnp.float32),
        ),
        compiler_params=pltpu.CompilerParams(
            dimension_semantics=("parallel",),
            vmem_limit_bytes=32 * 1024 * 1024,
        ),
        cost_estimate=pl.CostEstimate(
            flops=5 * total, transcendentals=0,
            bytes_accessed=in_bytes + out_bytes),
    )(p2, t2, m2)

    # Tiny final reduction + division (trivial relative to the HBM stream).
    return (jnp.sum(sse_part) / jnp.sum(m_part)).astype(jnp.float32)


def masked_mse_loss_ref(pred, target, mask):
    """Pure-JAX reference for correctness checking."""
    diff = pred * mask - target
    return jnp.sum(diff * diff) / jnp.sum(mask)


if __name__ == "__main__":
    key = jax.random.PRNGKey(0)
    k1, k2, k3 = jax.random.split(key, 3)

    # Small shape matching the module's batch*seq_len convention.
    batch, seq_len = 2, 8
    pred = jax.random.normal(k1, (batch, seq_len), dtype=jnp.float32)
    target = jax.random.normal(k2, (batch, seq_len), dtype=jnp.float32)
    mask = (jax.random.uniform(k3, (batch, seq_len)) > 0.3).astype(jnp.float32)
    mask = mask.at[0, 0].set(1.0)   # ensure sum(mask) > 0

    loss = masked_mse_loss(pred, target, mask)
    jax.block_until_ready(loss)
    ref = masked_mse_loss_ref(pred, target, mask)
    assert jnp.allclose(loss, ref, rtol=1e-5, atol=1e-5), (loss, ref)

    # Second (still small) shape that exercises the multi-block grid path.
    k4, k5, k6 = jax.random.split(jax.random.PRNGKey(1), 3)
    b2, s2 = 16, 128
    pred2 = jax.random.normal(k4, (b2, s2), dtype=jnp.float32)
    target2 = jax.random.normal(k5, (b2, s2), dtype=jnp.float32)
    mask2 = (jax.random.uniform(k6, (b2, s2)) > 0.5).astype(jnp.float32)
    mask2 = mask2.at[0, 0].set(1.0)

    loss2 = masked_mse_loss(pred2, target2, mask2, lanes=128, tile_rows=8)
    jax.block_until_ready(loss2)
    ref2 = masked_mse_loss_ref(pred2, target2, mask2)
    assert jnp.allclose(loss2, ref2, rtol=1e-5, atol=1e-5), (loss2, ref2)

    print("KERNEL_OK")
</pallas_src>

<mosaic_0001>
module attributes {stable_mosaic.version = 11 : i64} {
  func.func @_masked_mse_kernel(%arg0: i32, %arg1: memref<8x1024xf32, #tpu.memory_space<vmem>>, %arg2: memref<8x1024xf32, #tpu.memory_space<vmem>>, %arg3: memref<8x1024xf32, #tpu.memory_space<vmem>>, %arg4: memref<8x1024xf32, #tpu.memory_space<vmem>>, %arg5: memref<8x1024xf32, #tpu.memory_space<vmem>>) attributes {dimension_semantics = [#tpu.dimension_semantics<parallel>], iteration_bounds = array<i64: 1>, scalar_prefetch = 0 : i64, scratch_operands = 0 : i64, tpu.core_type = #tpu.core_type<tc>, window_params = [{transform_indices = @transform_0, window_bounds = array<i64: 8, 1024>}, {transform_indices = @transform_1, window_bounds = array<i64: 8, 1024>}, {transform_indices = @transform_2, window_bounds = array<i64: 8, 1024>}, {transform_indices = @transform_3, window_bounds = array<i64: 8, 1024>}, {transform_indices = @transform_4, window_bounds = array<i64: 8, 1024>}]} {
    %c0 = arith.constant 0 : index
    %c0_0 = arith.constant 0 : index
    %0 = vector.load %arg1[%c0, %c0_0] : memref<8x1024xf32, #tpu.memory_space<vmem>>, vector<8x1024xf32>
    %c0_1 = arith.constant 0 : index
    %c0_2 = arith.constant 0 : index
    %1 = vector.load %arg2[%c0_1, %c0_2] : memref<8x1024xf32, #tpu.memory_space<vmem>>, vector<8x1024xf32>
    %c0_3 = arith.constant 0 : index
    %c0_4 = arith.constant 0 : index
    %2 = vector.load %arg3[%c0_3, %c0_4] : memref<8x1024xf32, #tpu.memory_space<vmem>>, vector<8x1024xf32>
    %3 = arith.mulf %0, %2 : vector<8x1024xf32>
    %4 = arith.subf %3, %1 : vector<8x1024xf32>
    %5 = arith.mulf %4, %4 : vector<8x1024xf32>
    %6 = vector.shape_cast %5 : vector<8x1024xf32> to vector<1x8x1024xf32>
    %cst = arith.constant dense<0.000000e+00> : vector<8x1024xf32>
    %7 = vector.multi_reduction <add>, %6, %cst [0] : vector<1x8x1024xf32> to vector<8x1024xf32>
    %c0_5 = arith.constant 0 : index
    %c0_6 = arith.constant 0 : index
    %8 = vector.load %arg4[%c0_5, %c0_6] : memref<8x1024xf32, #tpu.memory_space<vmem>>, vector<8x1024xf32>
    tpu.vector_store %arg4[%c0_5, %c0_6], %7 {strides = array<i32>} : memref<8x1024xf32, #tpu.memory_space<vmem>>, vector<8x1024xf32>,
    %9 = vector.shape_cast %2 : vector<8x1024xf32> to vector<1x8x1024xf32>
    %cst_7 = arith.constant dense<0.000000e+00> : vector<8x1024xf32>
    %10 = vector.multi_reduction <add>, %9, %cst_7 [0] : vector<1x8x1024xf32> to vector<8x1024xf32>
    %c0_8 = arith.constant 0 : index
    %c0_9 = arith.constant 0 : index
    %11 = vector.load %arg5[%c0_8, %c0_9] : memref<8x1024xf32, #tpu.memory_space<vmem>>, vector<8x1024xf32>
    tpu.vector_store %arg5[%c0_8, %c0_9], %10 {strides = array<i32>} : memref<8x1024xf32, #tpu.memory_space<vmem>>, vector<8x1024xf32>,
    return
  }
  func.func @transform_0(%arg0: i32) -> (i32, i32) {
    %c0_i32 = arith.constant 0 : i32
    %c0_i32_0 = arith.constant 0 : i32
    return %arg0, %c0_i32 : i32, i32
  }
  func.func @transform_1(%arg0: i32) -> (i32, i32) {
    %c0_i32 = arith.constant 0 : i32
    %c0_i32_0 = arith.constant 0 : i32
    return %arg0, %c0_i32 : i32, i32
  }
  func.func @transform_2(%arg0: i32) -> (i32, i32) {
    %c0_i32 = arith.constant 0 : i32
    %c0_i32_0 = arith.constant 0 : i32
    return %arg0, %c0_i32 : i32, i32
  }
  func.func @transform_3(%arg0: i32) -> (i32, i32) {
    %c0_i32 = arith.constant 0 : i32
    %c0_i32_0 = arith.constant 0 : i32
    return %arg0, %c0_i32 : i32, i32
  }
  func.func @transform_4(%arg0: i32) -> (i32, i32) {
    %c0_i32 = arith.constant 0 : i32
    %c0_i32_0 = arith.constant 0 : i32
    return %arg0, %c0_i32 : i32, i32
  }
}

</mosaic_0001>

<llo_original>
// kernel: tpu_custom_call.1
$region0: #{tpu_custom_call.1}
  #allocation0 [shape = 'u32[]', space=smem, size = 0x4, offset = 0x4, fixed_abs, tag = 'smem constant byte address 0x4 - core index']
  #allocation1 [shape = 'u32[72,128]{1,0:T(1,128)}', space=vmem, size = 0x9000, scoped, tag = 'internal scratch']
  %s0 = inlined_call_operand.hbm [shape: f32[8,1024], index: 0, kind: input, shape index: {}]
  %s1 = inlined_call_operand.hbm [shape: f32[8,1024], index: 1, kind: input, shape index: {}]
  %s2 = inlined_call_operand.hbm [shape: f32[8,1024], index: 2, kind: input, shape index: {}]
  %s3 = inlined_call_operand.hbm [shape: f32[8,1024], index: 3, kind: output, shape index: {0}]
  %s4 = inlined_call_operand.hbm [shape: f32[8,1024], index: 4, kind: output, shape index: {1}]
  %5 = xla_tuple %s3, %s4
  %s6 = sld [smem:[#allocation0]]
  $region42: #{tpu_custom_call.1} parent=0
    _
  %s8 = ssub.s32 1, %s6
  %s9 = scalar_select 0, %s8, %s6
  $region1: #{tpu_custom_call.1} parent=0
    #allocation2 [shape = 'u8[32768]{0}', space=vmem, size = 0x8000, scoped, tag = 'input window, operand 0, single buffered']
    #allocation3 [shape = 's32[1]{0}', space=sflag, size = 0x4, scoped, tag = 'scoped memory for tpu_custom_call.1']
    #allocation4 [shape = 's32[1]{0}', space=sflag, size = 0x4, scoped, tag = 'scoped memory for tpu_custom_call.1']
    #allocation5 [shape = 'u8[32768]{0}', space=vmem, size = 0x8000, scoped, tag = 'input window, operand 1, single buffered']
    #allocation6 [shape = 's32[1]{0}', space=sflag, size = 0x4, scoped, tag = 'scoped memory for tpu_custom_call.1']
    #allocation7 [shape = 'u8[32768]{0}', space=vmem, size = 0x8000, scoped, tag = 'input window, operand 2, single buffered']
    #allocation8 [shape = 'u8[32768]{0}', space=vmem, size = 0x8000, scoped, tag = 'output window, operand 0, single buffered']
    #allocation9 [shape = 'u8[32768]{0}', space=vmem, size = 0x8000, scoped, tag = 'output window, operand 1, single buffered']
    #allocation10 [shape = 's32[1]{0}', space=sflag, size = 0x4, scoped, tag = 'scoped memory for tpu_custom_call.1']
    %10 = vsyncpa [#allocation3], 0
    %11 = vsyncpa [#allocation6], 0
    %12 = vsyncpa [#allocation4], 0
    %13 = vsyncpa [#allocation10], 0
    // Predicated region
    $region2: #{tpu_custom_call.1} parent=1 // pred_check
      _
    $region3: #{tpu_custom_call.1} parent=1 // pred_check_branch
      %15 = sbr.rel (0) target = $region5
    $region4: #{tpu_custom_call.1} parent=1 // pred_region
      %17 = vsyncadd [#allocation3], 0
      %s19 = sshll.u32 %s0, 4
      %s20 = int_to_ptr.hbm [resolvable:$true] %s19
      %s21 = sshll.u32 [#allocation2], 4
      %s22 = int_to_ptr.vmem [resolvable:$true] %s21
      %24 = dma.hbm_to_vmem [thread:$0]  %s20, 1024, %s22, [#allocation3]
    $region5: #{tpu_custom_call.1} parent=1 // pred_fallthru
      _
    // Predicated region
    $region6: #{tpu_custom_call.1} parent=1 // pred_check
      _
    $region7: #{tpu_custom_call.1} parent=1 // pred_check_branch
      %26 = sbr.rel (0) target = $region9
    $region8: #{tpu_custom_call.1} parent=1 // pred_region
      %28 = vsyncadd [#allocation6], 0
      %s30 = sshll.u32 %s1, 4
      %s31 = int_to_ptr.hbm [resolvable:$true] %s30
      %s32 = sshll.u32 [#allocation5], 4
      %s33 = int_to_ptr.vmem [resolvable:$true] %s32
      %35 = dma.hbm_to_vmem [thread:$0]  %s31, 1024, %s33, [#allocation6]
    $region9: #{tpu_custom_call.1} parent=1 // pred_fallthru
      _
    // Predicated region
    $region10: #{tpu_custom_call.1} parent=1 // pred_check
      _
    $region11: #{tpu_custom_call.1} parent=1 // pred_check_branch
      %37 = sbr.rel (0) target = $region13
    $region12: #{tpu_custom_call.1} parent=1 // pred_region
      %39 = vsyncadd [#allocation6], 0
      %s41 = sshll.u32 %s2, 4
      %s42 = int_to_ptr.hbm [resolvable:$true] %s41
      %s43 = sshll.u32 [#allocation7], 4
      %s44 = int_to_ptr.vmem [resolvable:$true] %s43
      %46 = dma.hbm_to_vmem [thread:$0]  %s42, 1024, %s44, [#allocation6]
    $region13: #{tpu_custom_call.1} parent=1 // pred_fallthru
      _
    // Predicated region
    $region14: #{tpu_custom_call.1} parent=1 // pred_check
      _
    $region15: #{tpu_custom_call.1} parent=1 // pred_check_branch
      %48 = sbr.rel (0) target = $region17
    $region16: #{tpu_custom_call.1} parent=1 // pred_region
      %50 = dma.done [#allocation3], 1024
    $region17: #{tpu_custom_call.1} parent=1 // pred_fallthru
      _
    // Predicated region
    $region18: #{tpu_custom_call.1} parent=1 // pred_check
      _
    $region19: #{tpu_custom_call.1} parent=1 // pred_check_branch
      %52 = sbr.rel (0) target = $region21
    $region20: #{tpu_custom_call.1} parent=1 // pred_region
      %54 = dma.done [#allocation6], 1024
    $region21: #{tpu_custom_call.1} parent=1 // pred_fallthru
      _
    // Predicated region
    $region22: #{tpu_custom_call.1} parent=1 // pred_check
      _
    $region23: #{tpu_custom_call.1} parent=1 // pred_check_branch
      %56 = sbr.rel (0) target = $region25
    $region24: #{tpu_custom_call.1} parent=1 // pred_region
      %58 = dma.done [#allocation6], 1024
    $region25: #{tpu_custom_call.1} parent=1 // pred_fallthru
      _
    %v59 = vld [vmem:[#allocation2] sm:$0xff]
    %v60 = vld [vmem:[#allocation2 + $0x8] sm:$0xff]
    %v61 = vld [vmem:[#allocation2 + $0x10] sm:$0xff]
    %v62 = vld [vmem:[#allocation2 + $0x18] sm:$0xff]
    %v63 = vld [vmem:[#allocation2 + $0x20] sm:$0xff]
    %v64 = vld [vmem:[#allocation2 + $0x28] sm:$0xff]
    %v65 = vld [vmem:[#allocation2 + $0x30] sm:$0xff]
    %v66 = vld [vmem:[#allocation2 + $0x38] sm:$0xff]
    %v67 = vld [vmem:[#allocation5] sm:$0xff]
    %v68 = vld [vmem:[#allocation5 + $0x8] sm:$0xff]
    %v69 = vld [vmem:[#allocation5 + $0x10] sm:$0xff]
    %v70 = vld [vmem:[#allocation5 + $0x18] sm:$0xff]
    %v71 = vld [vmem:[#allocation5 + $0x20] sm:$0xff]
    %v72 = vld [vmem:[#allocation5 + $0x28] sm:$0xff]
    %v73 = vld [vmem:[#allocation5 + $0x30] sm:$0xff]
    %v74 = vld [vmem:[#allocation5 + $0x38] sm:$0xff]
    %v75 = vld [vmem:[#allocation7] sm:$0xff]
    %v76 = vld [vmem:[#allocation7 + $0x8] sm:$0xff]
    %v77 = vld [vmem:[#allocation7 + $0x10] sm:$0xff]
    %v78 = vld [vmem:[#allocation7 + $0x18] sm:$0xff]
    %v79 = vld [vmem:[#allocation7 + $0x20] sm:$0xff]
    %v80 = vld [vmem:[#allocation7 + $0x28] sm:$0xff]
    %v81 = vld [vmem:[#allocation7 + $0x30] sm:$0xff]
    %v82 = vld [vmem:[#allocation7 + $0x38] sm:$0xff]
    %v83 = vmul.f32 %v59, %v75
    %v84 = vmul.f32 %v60, %v76
    %v85 = vmul.f32 %v61, %v77
    %v86 = vmul.f32 %v62, %v78
    %v87 = vmul.f32 %v63, %v79
    %v88 = vmul.f32 %v64, %v80
    %v89 = vmul.f32 %v65, %v81
    %v90 = vmul.f32 %v66, %v82
    %v91 = vsub.f32 %v83, %v67
    %v92 = vsub.f32 %v84, %v68
    %v93 = vsub.f32 %v85, %v69
    %v94 = vsub.f32 %v86, %v70
    %v95 = vsub.f32 %v87, %v71
    %v96 = vsub.f32 %v88, %v72
    %v97 = vsub.f32 %v89, %v73
    %v98 = vsub.f32 %v90, %v74
    %v99 = vmul.f32 %v91, %v91
    %v100 = vmul.f32 %v92, %v92
    %v101 = vmul.f32 %v93, %v93
    %v102 = vmul.f32 %v94, %v94
    %v103 = vmul.f32 %v95, %v95
    %v104 = vmul.f32 %v96, %v96
    %v105 = vmul.f32 %v97, %v97
    %v106 = vmul.f32 %v98, %v98
    %v107 = vadd.f32 %v99, 0.0
    %v108 = vadd.f32 %v100, 0.0
    %v109 = vadd.f32 %v101, 0.0
    %v110 = vadd.f32 %v102, 0.0
    %v111 = vadd.f32 %v103, 0.0
    %v112 = vadd.f32 %v104, 0.0
    %v113 = vadd.f32 %v105, 0.0
    %v114 = vadd.f32 %v106, 0.0
    %115 = vst [vmem:[#allocation8] sm:$0xff] %v107
    %116 = vst [vmem:[#allocation8 + $0x8] sm:$0xff] %v108
    %117 = vst [vmem:[#allocation8 + $0x10] sm:$0xff] %v109
    %118 = vst [vmem:[#allocation8 + $0x18] sm:$0xff] %v110
    %119 = vst [vmem:[#allocation8 + $0x20] sm:$0xff] %v111
    %120 = vst [vmem:[#allocation8 + $0x28] sm:$0xff] %v112
    %121 = vst [vmem:[#allocation8 + $0x30] sm:$0xff] %v113
    %122 = vst [vmem:[#allocation8 + $0x38] sm:$0xff] %v114
    %v123 = vadd.f32 %v75, 0.0
    %v124 = vadd.f32 %v76, 0.0
    %v125 = vadd.f32 %v77, 0.0
    %v126 = vadd.f32 %v78, 0.0
    %v127 = vadd.f32 %v79, 0.0
    %v128 = vadd.f32 %v80, 0.0
    %v129 = vadd.f32 %v81, 0.0
    %v130 = vadd.f32 %v82, 0.0
    %131 = vst [vmem:[#allocation9] sm:$0xff] %v123
    %132 = vst [vmem:[#allocation9 + $0x8] sm:$0xff] %v124
    %133 = vst [vmem:[#allocation9 + $0x10] sm:$0xff] %v125
    %134 = vst [vmem:[#allocation9 + $0x18] sm:$0xff] %v126
    %135 = vst [vmem:[#allocation9 + $0x20] sm:$0xff] %v127
    %136 = vst [vmem:[#allocation9 + $0x28] sm:$0xff] %v128
    %137 = vst [vmem:[#allocation9 + $0x30] sm:$0xff] %v129
    %138 = vst [vmem:[#allocation9 + $0x38] sm:$0xff] %v130
    // Predicated region
    $region26: #{tpu_custom_call.1} parent=1 // pred_check
      _
    $region27: #{tpu_custom_call.1} parent=1 // pred_check_branch
      %140 = sbr.rel (0) target = $region29
    $region28: #{tpu_custom_call.1} parent=1 // pred_region
      %142 = vsyncadd [#allocation4], 0
      %s144 = sshll.u32 [#allocation8], 4
      %s145 = int_to_ptr.vmem [resolvable:$true] %s144
      %s146 = sshll.u32 %s3, 4
      %s147 = int_to_ptr.hbm [resolvable:$true] %s146
      %149 = dma.vmem_to_hbm [thread:$0]  %s145, 1024, %s147, [#allocation4]
    $region29: #{tpu_custom_call.1} parent=1 // pred_fallthru
      _
    // Predicated region
    $region30: #{tpu_custom_call.1} parent=1 // pred_check
      _
    $region31: #{tpu_custom_call.1} parent=1 // pred_check_branch
      %151 = sbr.rel (0) target = $region33
    $region32: #{tpu_custom_call.1} parent=1 // pred_region
      %153 = vsyncadd [#allocation10], 0
      %s155 = sshll.u32 [#allocation9], 4
      %s156 = int_to_ptr.vmem [resolvable:$true] %s155
      %s157 = sshll.u32 %s4, 4
      %s158 = int_to_ptr.hbm [resolvable:$true] %s157
      %160 = dma.vmem_to_hbm [thread:$0]  %s156, 1024, %s158, [#allocation10]
    $region33: #{tpu_custom_call.1} parent=1 // pred_fallthru
      _
    // Predicated region
    $region34: #{tpu_custom_call.1} parent=1 // pred_check
      _
    $region35: #{tpu_custom_call.1} parent=1 // pred_check_branch
      %162 = sbr.rel (0) target = $region37
    $region36: #{tpu_custom_call.1} parent=1 // pred_region
      %164 = dma.done [#allocation4], 1024
    $region37: #{tpu_custom_call.1} parent=1 // pred_fallthru
      _
    // Predicated region
    $region38: #{tpu_custom_call.1} parent=1 // pred_check
      _
    $region39: #{tpu_custom_call.1} parent=1 // pred_check_branch
      %166 = sbr.rel (0) target = $region41
    $region40: #{tpu_custom_call.1} parent=1 // pred_region
      %168 = dma.done [#allocation10], 1024
    $region41: #{tpu_custom_call.1} parent=1 // pred_fallthru
      _
    %169 = vsyncpa [#allocation3], 1
    %170 = vsyncpa [#allocation6], 1
    %171 = vsyncpa [#allocation4], 1
    %172 = vsyncpa [#allocation10], 1

</llo_original>
